<compile_context>
chip_gen: v7x
topology: tpu7x:2x2x1
jax: 0.10.0
libtpu: 0.0.40
codegen_flags: <defaults>
</compile_context>

<pallas_src>
import jax
import jax.numpy as jnp
from jax.experimental import pallas as pl
from jax.experimental.pallas import tpu as pltpu

SEG = 32            # segment size
NSEG = 4            # segments per operand
FEAT = SEG * NSEG   # 128 flat feature size (maps to the 128-lane axis)
TM_MAX = 512        # max batch tile (rows); multiple of 8 sublanes


def _round_up(x: int, m: int) -> int:
    return ((x + m - 1) // m) * m


# ----------------------------------------------------------------------------
# Fused Pallas kernel (the single hot path): out = x0 @ W + x0 * x1 * c
# ----------------------------------------------------------------------------
def _fused_kernel(x0_ref, x1_ref, w_ref, c_ref, o_ref):
    x0 = x0_ref[...]
    # segmented linear: block matmul on the MXU, f32 accumulation
    lin = jnp.dot(x0, w_ref[...], preferred_element_type=jnp.float32)
    # segmented diagonal bilinear: elementwise on the VPU (free in MXU shadow)
    bil = x0.astype(jnp.float32) * x1_ref[...].astype(jnp.float32) * c_ref[...]
    o_ref[...] = (lin + bil).astype(o_ref.dtype)


def fused_segmented_polynomial(x0, x1, w_block, c_vec):
    """out[b, :] = x0[b, :] @ w_block + x0[b, :] * x1[b, :] * c_vec   (f32 math)."""
    B, F = x0.shape
    assert F == FEAT and x1.shape == (B, F)

    # Batch tile: as large as possible up to TM_MAX, multiple of 8 sublanes.
    tm = min(TM_MAX, _round_up(B, 8))
    n_tiles = pl.cdiv(B, tm)
    Bp = n_tiles * tm
    if Bp != B:
        pad = Bp - B
        x0 = jnp.pad(x0, ((0, pad), (0, 0)))
        x1 = jnp.pad(x1, ((0, pad), (0, 0)))

    cost = pl.CostEstimate(
        flops=2 * Bp * F * F + 3 * Bp * F,
        transcendentals=0,
        bytes_accessed=(3 * Bp * F + F * F + F) * 4,
    )

    out = pl.pallas_call(
        _fused_kernel,
        out_shape=jax.ShapeDtypeStruct((Bp, F), x0.dtype),
        grid=(n_tiles,),
        in_specs=[
            pl.BlockSpec((tm, F), lambda i: (i, 0)),   # x0 tile
            pl.BlockSpec((tm, F), lambda i: (i, 0)),   # x1 tile
            pl.BlockSpec((F, F), lambda i: (0, 0)),    # weight: constant -> resident
            pl.BlockSpec((1, F), lambda i: (0, 0)),    # bilinear coeffs: resident
        ],
        out_specs=pl.BlockSpec((tm, F), lambda i: (i, 0)),
        compiler_params=pltpu.CompilerParams(
            dimension_semantics=("parallel",),
        ),
        cost_estimate=cost,
    )(x0, x1, w_block, c_vec)

    return out[:B] if Bp != B else out


# ----------------------------------------------------------------------------
# Module analog (glue: parameter assembly, gather/scatter, buffer accumulation)
# ----------------------------------------------------------------------------
class SegmentedPolynomialNaivePallas:
    def __init__(self, key):
        k0, k1 = jax.random.split(key)
        # op0 path coefficients: (in_seg, out_seg, u, v), deterministic
        self.lin_paths = (
            jax.random.normal(k0, (NSEG, NSEG, SEG, SEG), jnp.float32) / SEG
        )
        # assemble block weight matrix (FEAT_in, FEAT_out) from the path coefficients
        self.w_block = jnp.transpose(self.lin_paths, (0, 2, 1, 3)).reshape(FEAT, FEAT)
        # op1 path coefficients: one (SEG,) vector per diagonal (i, i, i) path
        self.bil_paths = jax.random.normal(k1, (NSEG, SEG), jnp.float32)
        self.c_vec = self.bil_paths.reshape(1, FEAT)

        self.num_inputs = 2
        self.num_outputs = 1
        self.input_sizes = [FEAT, FEAT]
        self.out_size = [FEAT]
        # Both operations write output buffer 0; scatter_add is linear, so their
        # sum can be computed fused and routed through the buffer logic once.
        self.b_out = 0

    def __call__(self, inputs, input_indices=None, output_shapes=None,
                 output_indices=None):
        input_indices = input_indices or {}
        output_shapes = output_shapes or {}
        output_indices = output_indices or {}
        inputs = list(inputs)

        # input validation (mirrors the torch checks)
        for i, (x, size) in enumerate(zip(inputs, self.input_sizes)):
            if x.ndim == 0:
                raise ValueError(f"Input {i} has no dimensions")
            if x.shape[-1] != size:
                raise ValueError(f"Input {i} has shape {x.shape}, expected {size}")

        # optional row gather (glue)
        for k, v in input_indices.items():
            inputs[k] = inputs[k][v]

        # batch broadcasting (size-1 batches broadcast to the common batch)
        batch_size = 1
        for x in inputs:
            if x.shape[0] != 1:
                assert batch_size in (1, x.shape[0])
                batch_size = x.shape[0]
        inputs = [
            jnp.broadcast_to(x, (batch_size, x.shape[-1])) if x.shape[0] == 1 else x
            for x in inputs
        ]

        # fused segmented polynomial (single Pallas hot path: op0 + op1 + add)
        out = fused_segmented_polynomial(inputs[0], inputs[1], self.w_block, self.c_vec)

        out_buffers = [None] * self.num_outputs
        b = self.b_out
        if b in output_indices:
            idx = output_indices[b]
            n_rows = output_shapes[b].shape[0]
            if out.shape[0] == 1 and idx.shape[0] > 1:
                out = jnp.broadcast_to(out, (idx.shape[0], out.shape[1]))
            out_buffers[b] = (
                jnp.zeros((n_rows, out.shape[-1]), out.dtype).at[idx].add(out)
            )
        else:
            out_buffers[b] = out
        return out_buffers


# ----------------------------------------------------------------------------
if __name__ == "__main__":
    key = jax.random.PRNGKey(0)
    kp, kx0, kx1 = jax.random.split(key, 3)

    module = SegmentedPolynomialNaivePallas(kp)

    # small deterministic example
    B = 16
    x0 = jax.random.normal(kx0, (B, FEAT), jnp.float32)
    x1 = jax.random.normal(kx1, (B, FEAT), jnp.float32)

    (out,) = module([x0, x1], {}, {}, {})
    out = jax.block_until_ready(out)

    # pure-JAX reference of the same segmented polynomial
    ref = x0 @ module.w_block + x0 * x1 * module.c_vec
    assert out.shape == (B, FEAT) and out.dtype == jnp.float32
    assert jnp.allclose(out, ref, atol=1e-4, rtol=1e-4)

    # exercise the non-multiple-of-tile (padded) batch path
    B2 = 13
    x0b = jax.random.normal(kx0, (B2, FEAT), jnp.float32)
    x1b = jax.random.normal(kx1, (B2, FEAT), jnp.float32)
    (out2,) = module([x0b, x1b], {}, {}, {})
    out2 = jax.block_until_ready(out2)
    ref2 = x0b @ module.w_block + x0b * x1b * module.c_vec
    assert out2.shape == (B2, FEAT)
    assert jnp.allclose(out2, ref2, atol=1e-4, rtol=1e-4)

    print("KERNEL_OK")
</pallas_src>

<mosaic_0001>
module attributes {stable_mosaic.version = 11 : i64} {
  func.func @_fused_kernel(%arg0: i32, %arg1: memref<16x128xf32, #tpu.memory_space<vmem>>, %arg2: memref<16x128xf32, #tpu.memory_space<vmem>>, %arg3: memref<128x128xf32, #tpu.memory_space<vmem>>, %arg4: memref<1x128xf32, #tpu.memory_space<vmem>>, %arg5: memref<16x128xf32, #tpu.memory_space<vmem>>) attributes {dimension_semantics = [#tpu.dimension_semantics<parallel>], iteration_bounds = array<i64: 1>, scalar_prefetch = 0 : i64, scratch_operands = 0 : i64, tpu.core_type = #tpu.core_type<tc>, window_params = [{transform_indices = @transform_0, window_bounds = array<i64: 16, 128>}, {transform_indices = @transform_1, window_bounds = array<i64: 16, 128>}, {pipeline_mode = #tpu.pipeline_mode<synchronous>, transform_indices = @transform_2, window_bounds = array<i64: 128, 128>}, {pipeline_mode = #tpu.pipeline_mode<synchronous>, transform_indices = @transform_3, window_bounds = array<i64: 1, 128>}, {transform_indices = @transform_4, window_bounds = array<i64: 16, 128>}]} {
    %c0 = arith.constant 0 : index
    %c0_0 = arith.constant 0 : index
    %0 = vector.load %arg1[%c0, %c0_0] : memref<16x128xf32, #tpu.memory_space<vmem>>, vector<16x128xf32>
    %c0_1 = arith.constant 0 : index
    %c0_2 = arith.constant 0 : index
    %1 = vector.load %arg3[%c0_1, %c0_2] : memref<128x128xf32, #tpu.memory_space<vmem>>, vector<128x128xf32>
    %cst = arith.constant dense<0.000000e+00> : vector<16x128xf32>
    %2 = tpu.matmul %0, %1, %cst {dimension_numbers = #tpu.dot_dimension_numbers<[1], [0], [0], [1], [0, 0, 1, 1], [], []>} : vector<16x128xf32>, vector<128x128xf32>, vector<16x128xf32> -> vector<16x128xf32>
    %c0_3 = arith.constant 0 : index
    %c0_4 = arith.constant 0 : index
    %3 = vector.load %arg2[%c0_3, %c0_4] : memref<16x128xf32, #tpu.memory_space<vmem>>, vector<16x128xf32>
    %4 = arith.mulf %0, %3 : vector<16x128xf32>
    %c0_5 = arith.constant 0 : index
    %c0_6 = arith.constant 0 : index
    %5 = vector.load %arg4[%c0_5, %c0_6] : memref<1x128xf32, #tpu.memory_space<vmem>>, vector<1x128xf32>
    %6 = vector.broadcast %5 : vector<1x128xf32> to vector<16x128xf32>
    %7 = arith.mulf %4, %6 : vector<16x128xf32>
    %8 = arith.addf %2, %7 : vector<16x128xf32>
    %c0_7 = arith.constant 0 : index
    %c0_8 = arith.constant 0 : index
    %9 = vector.load %arg5[%c0_7, %c0_8] : memref<16x128xf32, #tpu.memory_space<vmem>>, vector<16x128xf32>
    tpu.vector_store %arg5[%c0_7, %c0_8], %8 {strides = array<i32>} : memref<16x128xf32, #tpu.memory_space<vmem>>, vector<16x128xf32>,
    return
  }
  func.func @transform_0(%arg0: i32) -> (i32, i32) {
    %c0_i32 = arith.constant 0 : i32
    %c0_i32_0 = arith.constant 0 : i32
    return %arg0, %c0_i32 : i32, i32
  }
  func.func @transform_1(%arg0: i32) -> (i32, i32) {
    %c0_i32 = arith.constant 0 : i32
    %c0_i32_0 = arith.constant 0 : i32
    return %arg0, %c0_i32 : i32, i32
  }
  func.func @transform_2(%arg0: i32) -> (i32, i32) {
    %c0_i32 = arith.constant 0 : i32
    %c0_i32_0 = arith.constant 0 : i32
    %c0_i32_1 = arith.constant 0 : i32
    return %c0_i32, %c0_i32_0 : i32, i32
  }
  func.func @transform_3(%arg0: i32) -> (i32, i32) {
    %c0_i32 = arith.constant 0 : i32
    %c0_i32_0 = arith.constant 0 : i32
    %c0_i32_1 = arith.constant 0 : i32
    return %c0_i32, %c0_i32_0 : i32, i32
  }
  func.func @transform_4(%arg0: i32) -> (i32, i32) {
    %c0_i32 = arith.constant 0 : i32
    %c0_i32_0 = arith.constant 0 : i32
    return %arg0, %c0_i32 : i32, i32
  }
}

</mosaic_0001>

<llo_original>
// kernel: tpu_custom_call.1
$region0: #{tpu_custom_call.1}
  #allocation0 [shape = 'u32[]', space=smem, size = 0x4, offset = 0x4, fixed_abs, tag = 'smem constant byte address 0x4 - core index']
  #allocation1 [shape = 'u32[144,128]{1,0:T(1,128)}', space=vmem, size = 0x12000, scoped, tag = 'internal scratch']
  %s0 = inlined_call_operand.hbm [shape: f32[16,128], index: 0, kind: input, shape index: {}]
  %s1 = inlined_call_operand.hbm [shape: f32[16,128], index: 1, kind: input, shape index: {}]
  %s2 = inlined_call_operand.hbm [shape: f32[128,128], index: 2, kind: input, shape index: {}]
  %s3 = inlined_call_operand.vmem [shape: f32[1,128], index: 3, kind: input, shape index: {}]
  %s4 = inlined_call_operand.hbm [shape: f32[16,128], index: 4, kind: output, shape index: {}]
  %s5 = sld [smem:[#allocation0]]
  $region38: #{tpu_custom_call.1} parent=0
    _
  %s7 = ssub.s32 1, %s5
  %s8 = scalar_select 0, %s7, %s5
  $region1: #{tpu_custom_call.1} parent=0
    #allocation2 [shape = 'u8[8192]{0}', space=vmem, size = 0x2000, scoped, tag = 'input window, operand 0, single buffered']
    #allocation3 [shape = 's32[1]{0}', space=sflag, size = 0x4, scoped, tag = 'scoped memory for tpu_custom_call.1']
    #allocation4 [shape = 's32[1]{0}', space=sflag, size = 0x4, scoped, tag = 'scoped memory for tpu_custom_call.1']
    #allocation5 [shape = 'u8[8192]{0}', space=vmem, size = 0x2000, scoped, tag = 'input window, operand 1, single buffered']
    #allocation6 [shape = 's32[1]{0}', space=sflag, size = 0x4, scoped, tag = 'scoped memory for tpu_custom_call.1']
    #allocation7 [shape = 'u8[65536]{0}', space=vmem, size = 0x10000, scoped, tag = 'input window, operand 2, single buffered']
    #allocation8 [shape = 'u8[8192]{0}', space=vmem, size = 0x2000, scoped, tag = 'output window, operand 0, single buffered']
    %9 = vsyncpa [#allocation3], 0
    %10 = vsyncpa [#allocation6], 0
    %11 = vsyncpa [#allocation4], 0
    // Predicated region
    $region2: #{tpu_custom_call.1} parent=1 // pred_check
      _
    $region3: #{tpu_custom_call.1} parent=1 // pred_check_branch
      %13 = sbr.rel (0) target = $region5
    $region4: #{tpu_custom_call.1} parent=1 // pred_region
      %s15 = ssub.s32 256, 256
      %16 = vsyncadd [#allocation3], %s15
      %s17 = sshll.u32 [#allocation2], 4
      %s18 = int_to_ptr.vmem [resolvable:$true] %s17
      %23 = dma.hbm_to_vmem [thread:$0]  %s0, 256, %s18, [#allocation3], 128, 128, 8
    $region5: #{tpu_custom_call.1} parent=1 // pred_fallthru
      _
    // Predicated region
    $region6: #{tpu_custom_call.1} parent=1 // pred_check
      _
    $region7: #{tpu_custom_call.1} parent=1 // pred_check_branch
      %25 = sbr.rel (0) target = $region9
    $region8: #{tpu_custom_call.1} parent=1 // pred_region
      %s27 = ssub.s32 256, 256
      %28 = vsyncadd [#allocation6], %s27
      %s29 = sshll.u32 [#allocation5], 4
      %s30 = int_to_ptr.vmem [resolvable:$true] %s29
      %35 = dma.hbm_to_vmem [thread:$0]  %s1, 256, %s30, [#allocation6], 128, 128, 8
    $region9: #{tpu_custom_call.1} parent=1 // pred_fallthru
      _
    // Predicated region
    $region10: #{tpu_custom_call.1} parent=1 // pred_check
      _
    $region11: #{tpu_custom_call.1} parent=1 // pred_check_branch
      %37 = sbr.rel (0) target = $region13
    $region12: #{tpu_custom_call.1} parent=1 // pred_region
      %s39 = ssub.s32 2048, 2048
      %40 = vsyncadd [#allocation6], %s39
      %s41 = sshll.u32 [#allocation7], 4
      %s42 = int_to_ptr.vmem [resolvable:$true] %s41
      %47 = dma.hbm_to_vmem [thread:$0]  %s2, 2048, %s42, [#allocation6], 128, 128, 8
    $region13: #{tpu_custom_call.1} parent=1 // pred_fallthru
      _
    // Predicated region
    $region14: #{tpu_custom_call.1} parent=1 // pred_check
      _
    $region15: #{tpu_custom_call.1} parent=1 // pred_check_branch
      %49 = sbr.rel (0) target = $region17
    $region16: #{tpu_custom_call.1} parent=1 // pred_region
      _
    $region17: #{tpu_custom_call.1} parent=1 // pred_fallthru
      _
    // Predicated region
    $region18: #{tpu_custom_call.1} parent=1 // pred_check
      _
    $region19: #{tpu_custom_call.1} parent=1 // pred_check_branch
      %51 = sbr.rel (0) target = $region21
    $region20: #{tpu_custom_call.1} parent=1 // pred_region
      %52 = dma.done [#allocation3], 256
    $region21: #{tpu_custom_call.1} parent=1 // pred_fallthru
      _
    // Predicated region
    $region22: #{tpu_custom_call.1} parent=1 // pred_check
      _
    $region23: #{tpu_custom_call.1} parent=1 // pred_check_branch
      %54 = sbr.rel (0) target = $region25
    $region24: #{tpu_custom_call.1} parent=1 // pred_region
      %55 = dma.done [#allocation6], 256
    $region25: #{tpu_custom_call.1} parent=1 // pred_fallthru
      _
    // Predicated region
    $region26: #{tpu_custom_call.1} parent=1 // pred_check
      _
    $region27: #{tpu_custom_call.1} parent=1 // pred_check_branch
      %57 = sbr.rel (0) target = $region29
    $region28: #{tpu_custom_call.1} parent=1 // pred_region
      %58 = dma.done [#allocation6], 2048
    $region29: #{tpu_custom_call.1} parent=1 // pred_fallthru
      _
    %v59 = vld [vmem:[#allocation2] sm:$0xff]
    %v60 = vld [vmem:[#allocation2 + $0x8] sm:$0xff]
    %v61 = vld [vmem:[#allocation7] sm:$0xff]
    %v62 = vld [vmem:[#allocation7 + $0x8] sm:$0xff]
    %v63 = vld [vmem:[#allocation7 + $0x10] sm:$0xff]
    %v64 = vld [vmem:[#allocation7 + $0x18] sm:$0xff]
    %v65 = vld [vmem:[#allocation7 + $0x20] sm:$0xff]
    %v66 = vld [vmem:[#allocation7 + $0x28] sm:$0xff]
    %v67 = vld [vmem:[#allocation7 + $0x30] sm:$0xff]
    %v68 = vld [vmem:[#allocation7 + $0x38] sm:$0xff]
    %v69 = vld [vmem:[#allocation7 + $0x40] sm:$0xff]
    %v70 = vld [vmem:[#allocation7 + $0x48] sm:$0xff]
    %v71 = vld [vmem:[#allocation7 + $0x50] sm:$0xff]
    %v72 = vld [vmem:[#allocation7 + $0x58] sm:$0xff]
    %v73 = vld [vmem:[#allocation7 + $0x60] sm:$0xff]
    %v74 = vld [vmem:[#allocation7 + $0x68] sm:$0xff]
    %v75 = vld [vmem:[#allocation7 + $0x70] sm:$0xff]
    %v76 = vld [vmem:[#allocation7 + $0x78] sm:$0xff]
    %v77 = vld [vmem:[#allocation5] sm:$0xff]
    %v78 = vld [vmem:[#allocation5 + $0x8] sm:$0xff]
    %v79 = vmul.f32 %v59, %v77
    %v80 = vmul.f32 %v60, %v78
    %v81 = vld [vmem:[%s3] sm:$0x1]
    %v83 = vlaneseq
    %v84 = vshrl.u32 %v83, 7
    %v85 = vsub.s32 0, %v84
    %v86 = vrot.slane %v81, %v85
    %v88 = vmul.f32 %v79, %v86
    %v89 = vmul.f32 %v80, %v86
    %90 = vmatprep.subr.mxu0 0.0
    %91 = vmatpush1.msra.mxu0 %v61
    %92 = vmatprep.subr.mxu0 0.0
    %93 = vmatpush1.msra.mxu0 %v62
    %94 = vmatprep.subr.mxu0 0.0
    %95 = vmatpush1.msra.mxu0 %v63
    %96 = vmatprep.subr.mxu0 0.0
    %97 = vmatpush1.msra.mxu0 %v64
    %98 = vmatprep.subr.mxu0 0.0
    %99 = vmatpush1.msra.mxu0 %v65
    %100 = vmatprep.subr.mxu0 0.0
    %101 = vmatpush1.msra.mxu0 %v66
    %102 = vmatprep.subr.mxu0 0.0
    %103 = vmatpush1.msra.mxu0 %v67
    %104 = vmatprep.subr.mxu0 0.0
    %105 = vmatpush1.msra.mxu0 %v68
    %106 = vmatprep.subr.mxu0 0.0
    %107 = vmatpush1.msra.mxu0 %v69
    %108 = vmatprep.subr.mxu0 0.0
    %109 = vmatpush1.msra.mxu0 %v70
    %110 = vmatprep.subr.mxu0 0.0
    %111 = vmatpush1.msra.mxu0 %v71
    %112 = vmatprep.subr.mxu0 0.0
    %113 = vmatpush1.msra.mxu0 %v72
    %114 = vmatprep.subr.mxu0 0.0
    %115 = vmatpush1.msra.mxu0 %v73
    %116 = vmatprep.subr.mxu0 0.0
    %117 = vmatpush1.msra.mxu0 %v74
    %118 = vmatprep.subr.mxu0 0.0
    %119 = vmatpush1.msra.mxu0 %v75
    %120 = vmatprep.subr.mxu0 0.0
    %121 = vmatpush1.msra.mxu0 %v76
    %122 = vmatprep.subr.mxu0 0.0
    %123 = vmatpush1.msra.mxu0 0.0
    %124 = vmatprep.subr.mxu0 0.0
    %125 = vmatpush1.msra.mxu0 0.0
    %126 = vmatprep.subr.mxu0 0.0
    %127 = vmatpush1.msra.mxu0 0.0
    %128 = vmatprep.subr.mxu0 0.0
    %129 = vmatpush1.msra.mxu0 0.0
    %130 = vmatprep.subr.mxu0 0.0
    %131 = vmatpush1.msra.mxu0 0.0
    %132 = vmatprep.subr.mxu0 0.0
    %133 = vmatpush1.msra.mxu0 0.0
    %134 = vmatprep.subr.mxu0 0.0
    %135 = vmatpush1.msra.mxu0 0.0
    %136 = vmatprep.subr.mxu0 0.0
    %137 = vmatpush1.msra.mxu0 0.0
    %138 = vmatprep.subr.mxu0 0.0
    %139 = vmatpush1.msra.mxu0 0.0
    %140 = vmatprep.subr.mxu0 0.0
    %141 = vmatpush1.msra.mxu0 0.0
    %142 = vmatprep.subr.mxu0 0.0
    %143 = vmatpush1.msra.mxu0 0.0
    %144 = vmatprep.subr.mxu0 0.0
    %145 = vmatpush1.msra.mxu0 0.0
    %146 = vmatprep.subr.mxu0 0.0
    %147 = vmatpush1.msra.mxu0 0.0
    %148 = vmatprep.subr.mxu0 0.0
    %149 = vmatpush1.msra.mxu0 0.0
    %150 = vmatprep.subr.mxu0 0.0
    %151 = vmatpush1.msra.mxu0 0.0
    %152 = vmatprep.subr.mxu0 0.0
    %153 = vmatpush1.msra.mxu0 0.0
    %154 = vmatprep.mubr.f32.mxu0 0.0
    %155 = vmatmul.mubr.f32.gmra.mrb[0].mxu0 %v59
    %v156 = vpop.f32.mrb[0].mxu0
    %v157 = vadd.f32 %v88, %v156
    %v158 = vpop.f32.mrb[0].mxu0
    %159 = vmatprep.mubr.f32.mxu0 0.0
    %160 = vmatmul.mubr.f32.gmra.mrb[0].mxu0 %v60
    %v161 = vpop.f32.mrb[0].mxu0
    %v162 = vadd.f32 %v89, %v161
    %v163 = vpop.f32.mrb[0].mxu0
    %164 = vdwg.mxu0
    %165 = vst [vmem:[#allocation8] sm:$0xff] %v157
    %166 = vst [vmem:[#allocation8 + $0x8] sm:$0xff] %v162
    // Predicated region
    $region30: #{tpu_custom_call.1} parent=1 // pred_check
      _
    $region31: #{tpu_custom_call.1} parent=1 // pred_check_branch
      %168 = sbr.rel (0) target = $region33
    $region32: #{tpu_custom_call.1} parent=1 // pred_region
      %s170 = ssub.s32 256, 256
      %171 = vsyncadd [#allocation4], %s170
      %s172 = sshll.u32 [#allocation8], 4
      %s173 = int_to_ptr.vmem [resolvable:$true] %s172
      %178 = dma.vmem_to_hbm [thread:$0]  %s173, 256, %s4, [#allocation4], 128, 128, 8
    $region33: #{tpu_custom_call.1} parent=1 // pred_fallthru
      _
    // Predicated region
    $region34: #{tpu_custom_call.1} parent=1 // pred_check
      _
    $region35: #{tpu_custom_call.1} parent=1 // pred_check_branch
      %180 = sbr.rel (0) target = $region37
    $region36: #{tpu_custom_call.1} parent=1 // pred_region
      %181 = dma.done [#allocation4], 256
    $region37: #{tpu_custom_call.1} parent=1 // pred_fallthru
      _
    %182 = vsyncpa [#allocation3], 1
    %183 = vsyncpa [#allocation6], 1
    %184 = vsyncpa [#allocation4], 1

</llo_original>
